<compile_context>
chip_gen: v5e
topology: v5e:2x2
jax: 0.10.0
libtpu: 0.0.40
codegen_flags: <defaults>
</compile_context>

<pallas_src>
import jax
import jax.numpy as jnp
from jax.experimental import pallas as pl
from jax.experimental.pallas import tpu as pltpu


_SMALL_C_THRESHOLD = 32  # below this, K is too small to be worth an MXU pass


def attention_pool_kernel(x_ref, w1_ref, b1_ref, w2_ref, b2_ref, wc_ref, bc_ref, o_ref):
    # One grid step == one batch element (grid axis is "parallel").
    #   x_ref : (1, C, HW)  NCHW view with spatial flattened (no HBM transpose)
    #   w1_ref: (L, C)      attention Linear #1 weight (torch layout)
    #   b1_ref: (L, 1)      attention Linear #1 bias (column)
    #   w2_ref: (1, L)      attention Linear #2 weight
    #   b2_ref: (1,)        attention Linear #2 bias -- 1-D SMEM scalar
    #   wc_ref: (C, NC)     classifier weight (pre-transposed vs torch)
    #   bc_ref: (1, NC)     classifier bias
    #   o_ref : (1, 1, NC)  per-batch output row
    x = x_ref[0]                        # (C, HW); leading size-1 squeeze is free
    w1 = w1_ref[...]                    # (L, C)
    b1 = b1_ref[...]                    # (L, 1)
    L = w1.shape[0]
    C, HW = x.shape

    # ---- h1 = tanh(W1 @ x + b1) : (L, HW), HW kept lane-dense ---------------
    if C <= _SMALL_C_THRESHOLD:
        # K = C is tiny: an MXU pass would leave >96% of the 128/256-deep
        # systolic array idle, so do C rank-1 broadcast-FMA updates on the VPU.
        acc = jnp.broadcast_to(b1, (L, HW))
        for c in range(C):
            acc = acc + w1[:, c:c + 1] * x[c:c + 1, :]
    else:
        # Realistic WILDCAT C: single unbatched, lane-dense-K MXU contraction.
        # (Cast operands to bf16 in the wrapper on v6e/v7x for 2x MXU rate.)
        acc = jnp.dot(w1, x, preferred_element_type=jnp.float32) + b1
    h1 = jnp.tanh(acc)                  # EUP; dominant elementwise cost

    # ---- attention logits: w2 @ h1 + b2 -> (1, HW) --------------------------
    # Single unbatched contraction over L=128 (lane-dense N=HW), no weight
    # broadcast / batched matmul.
    scores = jnp.dot(w2_ref[...], h1, preferred_element_type=jnp.float32) + b2_ref[0]

    # ---- softmax over the spatial (lane) axis; exact reciprocal -------------
    m = jnp.max(scores, axis=-1, keepdims=True)
    e = jnp.exp(scores - m)
    a = e / jnp.sum(e, axis=-1, keepdims=True)            # (1, HW)

    # ---- attention-weighted pooling: VPU multiply + XLU lane reduce ---------
    # (avoids an M=1, N=C MXU pass that pays full push/pop for C lanes)
    pooled = jnp.sum(x * a, axis=-1, keepdims=True)       # (C, 1)

    # ---- classifier, written directly as the per-batch output row -----------
    # TODO(synk): at realistic C/NC, switch this to a lane-dense MXU dot with
    # NC padded to a multiple of 128.
    o_ref[0] = jnp.sum(pooled * wc_ref[...], axis=0, keepdims=True) + bc_ref[...]


def attention_forward(x_nchw, params):
    """x_nchw: (B, C, H, W) float32. Returns (B, num_classes)."""
    w1, b1, w2, b2, wct, bc = params
    B, C, H, W = x_nchw.shape
    HW = H * W
    L = w1.shape[0]
    NC = wct.shape[1]

    # Free view of NCHW: no HBM transpose pass, lane-dense HW innermost dim.
    x_bch = x_nchw.reshape(B, C, HW).astype(jnp.float32)

    b1_r = b1.reshape(L, 1).astype(jnp.float32)
    w2_r = w2.reshape(1, L).astype(jnp.float32)
    b2_r = b2.reshape(1).astype(jnp.float32)       # 1-D SMEM scalar (4 B, no tile pad)
    bc_r = bc.reshape(1, NC).astype(jnp.float32)

    out3 = pl.pallas_call(
        attention_pool_kernel,
        out_shape=jax.ShapeDtypeStruct((B, 1, NC), jnp.float32),
        grid=(B,),
        in_specs=[
            pl.BlockSpec((1, C, HW), lambda b: (b, 0, 0)),       # x: per-batch tile
            pl.BlockSpec((L, C), lambda b: (0, 0)),              # w1 (resident)
            pl.BlockSpec((L, 1), lambda b: (0, 0)),              # b1
            pl.BlockSpec((1, L), lambda b: (0, 0)),              # w2
            pl.BlockSpec(memory_space=pltpu.MemorySpace.SMEM),   # b2 scalar
            pl.BlockSpec((C, NC), lambda b: (0, 0)),             # wc
            pl.BlockSpec((1, NC), lambda b: (0, 0)),             # bc
        ],
        # Output block is full along its last two dims -> clean writeback; the
        # (B,1,NC)->(B,NC) reshape below is a free XLA op outside the kernel.
        out_specs=pl.BlockSpec((1, 1, NC), lambda b: (b, 0, 0)),
        compiler_params=pltpu.CompilerParams(
            # Batch-parallel grid: uses both v7x TensorCores; harmless on
            # single-TC v5e/v6e. For realistic WILDCAT sizes also tile HW and
            # set vmem_limit_bytes explicitly (keep per-step working set well
            # under v7x's 64 MiB VMEM).
            dimension_semantics=("parallel",),
        ),
    )(x_bch, w1.astype(jnp.float32), b1_r, w2_r, b2_r,
      wct.astype(jnp.float32), bc_r)
    return out3.reshape(B, NC)


def reference_forward(x_nchw, params):
    """Pure-JAX reference mirroring the PyTorch forward exactly."""
    w1, b1, w2, b2, wct, bc = params  # w1 (L,C), b1 (L,), w2 (1,L), b2 (1,), wct (C,NC), bc (NC,)
    B, C, H, W = x_nchw.shape
    HW = H * W
    x = x_nchw.reshape(B, C, HW)
    xx = jnp.transpose(x, (0, 2, 1)).reshape(-1, C)             # (B*HW, C)
    A = jnp.tanh(xx @ w1.T + b1) @ w2.T + b2                     # (B*HW, 1)
    A = A.reshape(B, HW, 1)
    A = jax.nn.softmax(A, axis=1)
    M = jnp.einsum("bch,bhk->bck", x, A).reshape(B, C)           # (B, C)
    return M @ wct + bc


if __name__ == "__main__":
    # Module hyperparameters: num_maps=1, num_classes=4 -> C = 4; spatial 16x16
    num_maps = 1
    num_classes = 4
    C = num_classes * num_maps
    L = 128  # self.L
    B, H, W = 2, 16, 16

    key = jax.random.PRNGKey(0)
    k_x, k1, k2, k3, k4, k5, k6 = jax.random.split(key, 7)

    x = jax.random.normal(k_x, (B, C, H, W), dtype=jnp.float32)

    # Deterministic synthetic parameters (torch-style layouts, classifier pre-transposed).
    w1 = 0.1 * jax.random.normal(k1, (L, C), dtype=jnp.float32)             # attention[0].weight (L, C)
    b1 = 0.1 * jax.random.normal(k2, (L,), dtype=jnp.float32)               # attention[0].bias
    w2 = 0.1 * jax.random.normal(k3, (1, L), dtype=jnp.float32)             # attention[2].weight (1, L)
    b2 = 0.1 * jax.random.normal(k4, (1,), dtype=jnp.float32)               # attention[2].bias
    wct = 0.1 * jax.random.normal(k5, (C, num_classes), dtype=jnp.float32)  # classifier.weight^T (C, NC)
    bc = 0.1 * jax.random.normal(k6, (num_classes,), dtype=jnp.float32)     # classifier.bias
    params = (w1, b1, w2, b2, wct, bc)

    y = attention_forward(x, params)
    y = jax.block_until_ready(y)

    y_ref = reference_forward(x, params)
    assert y.shape == (B, num_classes)
    # Exact softmax reciprocal -> tight tolerance again.
    assert jnp.allclose(y, y_ref, atol=1e-5, rtol=1e-5), "mismatch vs reference"

    print("KERNEL_OK")
</pallas_src>

<mosaic_0001>
module attributes {stable_mosaic.version = 11 : i64} {
  func.func @attention_pool_kernel(%arg0: i32, %arg1: memref<1x4x256xf32, #tpu.memory_space<vmem>>, %arg2: memref<128x4xf32, #tpu.memory_space<vmem>>, %arg3: memref<128x1xf32, #tpu.memory_space<vmem>>, %arg4: memref<1x128xf32, #tpu.memory_space<vmem>>, %arg5: memref<1xf32, #tpu.memory_space<smem>>, %arg6: memref<4x4xf32, #tpu.memory_space<vmem>>, %arg7: memref<1x4xf32, #tpu.memory_space<vmem>>, %arg8: memref<1x1x4xf32, #tpu.memory_space<vmem>>) attributes {dimension_semantics = [#tpu.dimension_semantics<parallel>], iteration_bounds = array<i64: 2>, scalar_prefetch = 0 : i64, scratch_operands = 0 : i64, tpu.core_type = #tpu.core_type<tc>, window_params = [{transform_indices = @transform_0, window_bounds = array<i64: 1, 4, 256>}, {pipeline_mode = #tpu.pipeline_mode<synchronous>, transform_indices = @transform_1, window_bounds = array<i64: 128, 4>}, {pipeline_mode = #tpu.pipeline_mode<synchronous>, transform_indices = @transform_2, window_bounds = array<i64: 128, 1>}, {pipeline_mode = #tpu.pipeline_mode<synchronous>, transform_indices = @transform_3, window_bounds = array<i64: 1, 128>}, {transform_indices = @transform_4, window_bounds = array<i64: 1>}, {pipeline_mode = #tpu.pipeline_mode<synchronous>, transform_indices = @transform_5, window_bounds = array<i64: 4, 4>}, {pipeline_mode = #tpu.pipeline_mode<synchronous>, transform_indices = @transform_6, window_bounds = array<i64: 1, 4>}, {transform_indices = @transform_7, window_bounds = array<i64: 1, 1, 4>}]} {
    %c0 = arith.constant 0 : index
    %c0_0 = arith.constant 0 : index
    %c0_1 = arith.constant 0 : index
    %0 = vector.load %arg1[%c0, %c0_0, %c0_1] : memref<1x4x256xf32, #tpu.memory_space<vmem>>, vector<1x4x256xf32>
    %1 = vector.shape_cast %0 : vector<1x4x256xf32> to vector<4x256xf32>
    %c0_2 = arith.constant 0 : index
    %c0_3 = arith.constant 0 : index
    %2 = vector.load %arg2[%c0_2, %c0_3] : memref<128x4xf32, #tpu.memory_space<vmem>>, vector<128x4xf32>
    %c0_4 = arith.constant 0 : index
    %c0_5 = arith.constant 0 : index
    %3 = vector.load %arg3[%c0_4, %c0_5] : memref<128x1xf32, #tpu.memory_space<vmem>>, vector<128x1xf32>
    %4 = vector.shape_cast %3 : vector<128x1xf32> to vector<128x1xf32>
    %5 = vector.broadcast %4 : vector<128x1xf32> to vector<128x256xf32>
    %6 = vector.extract_strided_slice %2 {offsets = [0, 0], sizes = [128, 1], strides = [1, 1]} : vector<128x4xf32> to vector<128x1xf32>
    %7 = vector.extract_strided_slice %1 {offsets = [0, 0], sizes = [1, 256], strides = [1, 1]} : vector<4x256xf32> to vector<1x256xf32>
    %8 = vector.broadcast %6 : vector<128x1xf32> to vector<128x256xf32>
    %9 = vector.broadcast %7 : vector<1x256xf32> to vector<128x256xf32>
    %10 = arith.mulf %8, %9 : vector<128x256xf32>
    %11 = arith.addf %5, %10 : vector<128x256xf32>
    %12 = vector.extract_strided_slice %2 {offsets = [0, 1], sizes = [128, 1], strides = [1, 1]} : vector<128x4xf32> to vector<128x1xf32>
    %13 = vector.extract_strided_slice %1 {offsets = [1, 0], sizes = [1, 256], strides = [1, 1]} : vector<4x256xf32> to vector<1x256xf32>
    %14 = vector.broadcast %12 : vector<128x1xf32> to vector<128x256xf32>
    %15 = vector.broadcast %13 : vector<1x256xf32> to vector<128x256xf32>
    %16 = arith.mulf %14, %15 : vector<128x256xf32>
    %17 = arith.addf %11, %16 : vector<128x256xf32>
    %18 = vector.extract_strided_slice %2 {offsets = [0, 2], sizes = [128, 1], strides = [1, 1]} : vector<128x4xf32> to vector<128x1xf32>
    %19 = vector.extract_strided_slice %1 {offsets = [2, 0], sizes = [1, 256], strides = [1, 1]} : vector<4x256xf32> to vector<1x256xf32>
    %20 = vector.broadcast %18 : vector<128x1xf32> to vector<128x256xf32>
    %21 = vector.broadcast %19 : vector<1x256xf32> to vector<128x256xf32>
    %22 = arith.mulf %20, %21 : vector<128x256xf32>
    %23 = arith.addf %17, %22 : vector<128x256xf32>
    %24 = vector.extract_strided_slice %2 {offsets = [0, 3], sizes = [128, 1], strides = [1, 1]} : vector<128x4xf32> to vector<128x1xf32>
    %25 = vector.extract_strided_slice %1 {offsets = [3, 0], sizes = [1, 256], strides = [1, 1]} : vector<4x256xf32> to vector<1x256xf32>
    %26 = vector.broadcast %24 : vector<128x1xf32> to vector<128x256xf32>
    %27 = vector.broadcast %25 : vector<1x256xf32> to vector<128x256xf32>
    %28 = arith.mulf %26, %27 : vector<128x256xf32>
    %29 = arith.addf %23, %28 : vector<128x256xf32>
    %30 = math.tanh %29 : vector<128x256xf32>
    %c0_6 = arith.constant 0 : index
    %c0_7 = arith.constant 0 : index
    %31 = vector.load %arg4[%c0_6, %c0_7] : memref<1x128xf32, #tpu.memory_space<vmem>>, vector<1x128xf32>
    %cst = arith.constant dense<0.000000e+00> : vector<1x256xf32>
    %32 = tpu.matmul %31, %30, %cst {dimension_numbers = #tpu.dot_dimension_numbers<[1], [0], [0], [1], [0, 0, 1, 1], [], []>} : vector<1x128xf32>, vector<128x256xf32>, vector<1x256xf32> -> vector<1x256xf32>
    %c0_8 = arith.constant 0 : index
    %33 = memref.load %arg5[%c0_8] : memref<1xf32, #tpu.memory_space<smem>>
    %34 = vector.broadcast %33 : f32 to vector<1x256xf32>
    %35 = arith.addf %32, %34 : vector<1x256xf32>
    %cst_9 = arith.constant dense<0xFF800000> : vector<1xf32>
    %36 = vector.multi_reduction <maximumf>, %35, %cst_9 [1] : vector<1x256xf32> to vector<1xf32>
    %37 = vector.shape_cast %36 : vector<1xf32> to vector<1x1xf32>
    %38 = vector.broadcast %37 : vector<1x1xf32> to vector<1x256xf32>
    %39 = arith.subf %35, %38 : vector<1x256xf32>
    %40 = math.exp %39 : vector<1x256xf32>
    %cst_10 = arith.constant dense<0.000000e+00> : vector<1xf32>
    %41 = vector.multi_reduction <add>, %40, %cst_10 [1] : vector<1x256xf32> to vector<1xf32>
    %42 = vector.shape_cast %41 : vector<1xf32> to vector<1x1xf32>
    %43 = vector.broadcast %42 : vector<1x1xf32> to vector<1x256xf32>
    %44 = arith.divf %40, %43 : vector<1x256xf32>
    %45 = vector.broadcast %44 : vector<1x256xf32> to vector<4x256xf32>
    %46 = arith.mulf %1, %45 : vector<4x256xf32>
    %cst_11 = arith.constant dense<0.000000e+00> : vector<4xf32>
    %47 = vector.multi_reduction <add>, %46, %cst_11 [1] : vector<4x256xf32> to vector<4xf32>
    %48 = vector.shape_cast %47 : vector<4xf32> to vector<4x1xf32>
    %c0_12 = arith.constant 0 : index
    %c0_13 = arith.constant 0 : index
    %49 = vector.load %arg6[%c0_12, %c0_13] : memref<4x4xf32, #tpu.memory_space<vmem>>, vector<4x4xf32>
    %50 = vector.broadcast %48 : vector<4x1xf32> to vector<4x4xf32>
    %51 = arith.mulf %50, %49 : vector<4x4xf32>
    %cst_14 = arith.constant dense<0.000000e+00> : vector<4xf32>
    %52 = vector.multi_reduction <add>, %51, %cst_14 [0] : vector<4x4xf32> to vector<4xf32>
    %53 = vector.shape_cast %52 : vector<4xf32> to vector<1x4xf32>
    %c0_15 = arith.constant 0 : index
    %c0_16 = arith.constant 0 : index
    %54 = vector.load %arg7[%c0_15, %c0_16] : memref<1x4xf32, #tpu.memory_space<vmem>>, vector<1x4xf32>
    %55 = arith.addf %53, %54 : vector<1x4xf32>
    %c0_17 = arith.constant 0 : index
    %c0_18 = arith.constant 0 : index
    %c0_19 = arith.constant 0 : index
    %56 = vector.load %arg8[%c0_17, %c0_18, %c0_19] : memref<1x1x4xf32, #tpu.memory_space<vmem>>, vector<1x1x4xf32>
    %57 = vector.shape_cast %56 : vector<1x1x4xf32> to vector<1x4xf32>
    %58 = vector.shape_cast %55 : vector<1x4xf32> to vector<1x1x4xf32>
    tpu.vector_store %arg8[%c0_17, %c0_18, %c0_19], %58 {strides = array<i32>} : memref<1x1x4xf32, #tpu.memory_space<vmem>>, vector<1x1x4xf32>,
    return
  }
  func.func @transform_0(%arg0: i32) -> (i32, i32, i32) {
    %c0_i32 = arith.constant 0 : i32
    %c0_i32_0 = arith.constant 0 : i32
    %c0_i32_1 = arith.constant 0 : i32
    return %arg0, %c0_i32, %c0_i32_0 : i32, i32, i32
  }
  func.func @transform_1(%arg0: i32) -> (i32, i32) {
    %c0_i32 = arith.constant 0 : i32
    %c0_i32_0 = arith.constant 0 : i32
    %c0_i32_1 = arith.constant 0 : i32
    return %c0_i32, %c0_i32_0 : i32, i32
  }
  func.func @transform_2(%arg0: i32) -> (i32, i32) {
    %c0_i32 = arith.constant 0 : i32
    %c0_i32_0 = arith.constant 0 : i32
    %c0_i32_1 = arith.constant 0 : i32
    return %c0_i32, %c0_i32_0 : i32, i32
  }
  func.func @transform_3(%arg0: i32) -> (i32, i32) {
    %c0_i32 = arith.constant 0 : i32
    %c0_i32_0 = arith.constant 0 : i32
    %c0_i32_1 = arith.constant 0 : i32
    return %c0_i32, %c0_i32_0 : i32, i32
  }
  func.func @transform_4(%arg0: i32) -> i32 {
    %c0_i32 = arith.constant 0 : i32
    %c0_i32_0 = arith.constant 0 : i32
    return %c0_i32 : i32
  }
  func.func @transform_5(%arg0: i32) -> (i32, i32) {
    %c0_i32 = arith.constant 0 : i32
    %c0_i32_0 = arith.constant 0 : i32
    %c0_i32_1 = arith.constant 0 : i32
    return %c0_i32, %c0_i32_0 : i32, i32
  }
  func.func @transform_6(%arg0: i32) -> (i32, i32) {
    %c0_i32 = arith.constant 0 : i32
    %c0_i32_0 = arith.constant 0 : i32
    %c0_i32_1 = arith.constant 0 : i32
    return %c0_i32, %c0_i32_0 : i32, i32
  }
  func.func @transform_7(%arg0: i32) -> (i32, i32, i32) {
    %c0_i32 = arith.constant 0 : i32
    %c0_i32_0 = arith.constant 0 : i32
    %c0_i32_1 = arith.constant 0 : i32
    return %arg0, %c0_i32, %c0_i32_0 : i32, i32, i32
  }
}

</mosaic_0001>

<llo_original>
// kernel: tpu_custom_call.1
$region0: #{tpu_custom_call.1}
  #allocation0 [shape = 'u32[]', space=smem, size = 0x4, offset = 0x4, fixed_abs, tag = 'smem constant byte address 0x4 - core index']
  #allocation1 [shape = 'u32[72,128]{1,0:T(1,128)}', space=vmem, size = 0x9000, scoped, tag = 'internal scratch']
  #allocation2 [shape = 'f32[1]{0:T(128)S(6)}', space=smem, size = 0x200, scoped, tag = 'scoped memory for tpu_custom_call.1']
  %s0 = inlined_call_operand.vmem [shape: f32[2,4,256], index: 0, kind: input, shape index: {}]
  %s1 = inlined_call_operand.vmem [shape: f32[128,4], index: 1, kind: input, shape index: {}]
  %s2 = inlined_call_operand.vmem [shape: f32[128,1], index: 2, kind: input, shape index: {}]
  %s3 = inlined_call_operand.vmem [shape: f32[1,128], index: 3, kind: input, shape index: {}]
  %s4 = inlined_call_operand.<no memory space> [shape: f32[1], index: 4, kind: input, shape index: {}]
  %s5 = inlined_call_operand.vmem [shape: f32[4,4], index: 5, kind: input, shape index: {}]
  %s6 = inlined_call_operand.vmem [shape: f32[1,4], index: 6, kind: input, shape index: {}]
  %s7 = inlined_call_operand.hbm [shape: f32[2,1,4], index: 7, kind: output, shape index: {}]
  %s8 = sld [smem:[#allocation0]]
  $region61: #{tpu_custom_call.1} parent=0
    _
  %s10 = ssub.s32 1, %s8
  %s11 = scalar_select 0, %s10, %s8
  %12 = sst [smem:[#allocation2]] %s4
  $region1: #{tpu_custom_call.1} parent=0
    #allocation3 [shape = 'u8[1024]{0}', space=vmem, size = 0x400, scoped, tag = 'output window, operand 0']
    #allocation4 [shape = 's32[2]{0}', space=sflag, size = 0x8, scoped, tag = 'scoped memory for tpu_custom_call.1']
    %13 = vsyncpa [#allocation4], 0
    %s14 = scalar_lea.sflag [#allocation4], 1
    %15 = vsyncpa %s14, 0
    loop: start=0, step=1, limit=4
    $region2: #{tpu_custom_call.1} parent=1 // loop_pre_header
      _
    $region3: #{tpu_custom_call.1} parent=1 // loop_header
      %s17 = sphi 0, %s21
      %p18 = scmp.ge.s32.totalorder %s17, 4
      %s27 = sphi 0, %s29
      %s30 = sphi 0, %s27
      %s31 = sphi 0, %s30
      %s47 = sphi 0, %s31
      %s51 = sphi 0, %s51
      %s53 = sphi 0, %s51
      %s54 = sphi 0, %s53
      %s68 = sphi 0, %s54
      %s72 = sphi 0, %s72
      %s74 = sphi 0, %s72
      %s75 = sphi 0, %s74
      %s89 = sphi 0, %s75
      %s93 = sphi 0, %s93
      %s95 = sphi 0, %s93
      %s96 = sphi 0, %s95
      %s110 = sphi 0, %s96
      %s114 = sphi 0, %s114
      %s116 = sphi 0, %s114
      %s117 = sphi 0, %s116
      %s131 = sphi 0, %s117
      %s135 = sphi 0, %s135
      %s137 = sphi 0, %s135
      %s138 = sphi 0, %s137
      %s152 = sphi 0, %s138
      %s156 = sphi 0, %s156
      %s158 = sphi 0, %s156
      %s159 = sphi 0, %s158
      %s173 = sphi 0, %s159
      %s179 = sphi 0, %s181
      %s182 = sphi 0, %s179
      %s183 = sphi 0, %s182
      %s199 = sphi 0, %s183
    $region4: #{tpu_custom_call.1} parent=1 // loop_header_branch
      %20 = sbr.rel (%p18) target = $region8
    $region5: #{tpu_custom_call.1} parent=1 // loop_body
      %s22 = ssub.s32 %s17, 1
      %s23 = ssub.s32 %s17, 2
      %s24 = sadd.s32 %s17, 1
      %s25 = ssub.s32 %s17, %s24
      %p26 = scmp.eq.s32.totalorder %s25, 0
      %s28 = sadd.s32 %s27, 1
      %s29 = scalar_select %p26, %s27, %s28
      %p32 = pneg %p26
      %p33 = scmp.eq.s32.totalorder %s17, 1
      %p34 = por %p32, %p33
      %p35 = scmp.ne.s32.totalorder %s27, %s30
      %p36 = scmp.eq.s32.totalorder %s17, 0
      %p37 = por %p35, %p36
      %p38 = scmp.ne.s32.totalorder %s27, %s30
      %p39 = scmp.eq.s32.totalorder %s22, 1
      %p40 = por %p38, %p39
      %p41 = scmp.ne.s32.totalorder %s30, %s31
      %p42 = scmp.eq.s32.totalorder %s22, 0
      %p43 = por %p41, %p42
      %p44 = scmp.ne.s32.totalorder %s30, %s31
      %p45 = scmp.eq.s32.totalorder %s23, 1
      %p46 = por %p44, %p45
      %p48 = scmp.ne.s32.totalorder %s31, %s47
      %p49 = scmp.eq.s32.totalorder %s23, 0
      %p50 = por %p48, %p49
      %s52 = sadd.s32 %s51, 1
      %p55 = scmp.eq.s32.totalorder %s17, 1
      %p56 = scmp.ne.s32.totalorder %s51, %s53
      %p57 = scmp.eq.s32.totalorder %s17, 0
      %p58 = por %p56, %p57
      %p59 = scmp.ne.s32.totalorder %s51, %s53
      %p60 = scmp.eq.s32.totalorder %s22, 1
      %p61 = por %p59, %p60
      %p62 = scmp.ne.s32.totalorder %s53, %s54
      %p63 = scmp.eq.s32.totalorder %s22, 0
      %p64 = por %p62, %p63
      %p65 = scmp.ne.s32.totalorder %s53, %s54
      %p66 = scmp.eq.s32.totalorder %s23, 1
      %p67 = por %p65, %p66
      %p69 = scmp.ne.s32.totalorder %s54, %s68
      %p70 = scmp.eq.s32.totalorder %s23, 0
      %p71 = por %p69, %p70
      %s73 = sadd.s32 %s72, 1
      %p76 = scmp.eq.s32.totalorder %s17, 1
      %p77 = scmp.ne.s32.totalorder %s72, %s74
      %p78 = scmp.eq.s32.totalorder %s17, 0
      %p79 = por %p77, %p78
      %p80 = scmp.ne.s32.totalorder %s72, %s74
      %p81 = scmp.eq.s32.totalorder %s22, 1
      %p82 = por %p80, %p81
      %p83 = scmp.ne.s32.totalorder %s74, %s75
      %p84 = scmp.eq.s32.totalorder %s22, 0
      %p85 = por %p83, %p84
      %p86 = scmp.ne.s32.totalorder %s74, %s75
      %p87 = scmp.eq.s32.totalorder %s23, 1
      %p88 = por %p86, %p87
      %p90 = scmp.ne.s32.totalorder %s75, %s89
      %p91 = scmp.eq.s32.totalorder %s23, 0
      %p92 = por %p90, %p91
      %s94 = sadd.s32 %s93, 1
      %p97 = scmp.eq.s32.totalorder %s17, 1
      %p98 = scmp.ne.s32.totalorder %s93, %s95
      %p99 = scmp.eq.s32.totalorder %s17, 0
      %p100 = por %p98, %p99
      %p101 = scmp.ne.s32.totalorder %s93, %s95
      %p102 = scmp.eq.s32.totalorder %s22, 1
      %p103 = por %p101, %p102
      %p104 = scmp.ne.s32.totalorder %s95, %s96
      %p105 = scmp.eq.s32.totalorder %s22, 0
      %p106 = por %p104, %p105
      %p107 = scmp.ne.s32.totalorder %s95, %s96
      %p108 = scmp.eq.s32.totalorder %s23, 1
      %p109 = por %p107, %p108
      %p111 = scmp.ne.s32.totalorder %s96, %s110
      %p112 = scmp.eq.s32.totalorder %s23, 0
      %p113 = por %p111, %p112
      %s115 = sadd.s32 %s114, 1
      %p118 = scmp.eq.s32.totalorder %s17, 1
      %p119 = scmp.ne.s32.totalorder %s114, %s116
      %p120 = scmp.eq.s32.totalorder %s17, 0
      %p121 = por %p119, %p120
      %p122 = scmp.ne.s32.totalorder %s114, %s116
      %p123 = scmp.eq.s32.totalorder %s22, 1
      %p124 = por %p122, %p123
      %p125 = scmp.ne.s32.totalorder %s116, %s117
      %p126 = scmp.eq.s32.totalorder %s22, 0
      %p127 = por %p125, %p126
      %p128 = scmp.ne.s32.totalorder %s116, %s117
      %p129 = scmp.eq.s32.totalorder %s23, 1
      %p130 = por %p128, %p129
      %p132 = scmp.ne.s32.totalorder %s117, %s131
      %p133 = scmp.eq.s32.totalorder %s23, 0
      %p134 = por %p132, %p133
      %s136 = sadd.s32 %s135, 1
      %p139 = scmp.eq.s32.totalorder %s17, 1
      %p140 = scmp.ne.s32.totalorder %s135, %s137
      %p141 = scmp.eq.s32.totalorder %s17, 0
      %p142 = por %p140, %p141
      %p143 = scmp.ne.s32.totalorder %s135, %s137
      %p144 = scmp.eq.s32.totalorder %s22, 1
      %p145 = por %p143, %p144
      %p146 = scmp.ne.s32.totalorder %s137, %s138
      %p147 = scmp.eq.s32.totalorder %s22, 0
      %p148 = por %p146, %p147
      %p149 = scmp.ne.s32.totalorder %s137, %s138
      %p150 = scmp.eq.s32.totalorder %s23, 1
      %p151 = por %p149, %p150
      %p153 = scmp.ne.s32.totalorder %s138, %s152
      %p154 = scmp.eq.s32.totalorder %s23, 0
      %p155 = por %p153, %p154
      %s157 = sadd.s32 %s156, 1
      %p160 = scmp.eq.s32.totalorder %s17, 1
      %p161 = scmp.ne.s32.totalorder %s156, %s158
      %p162 = scmp.eq.s32.totalorder %s17, 0
      %p163 = por %p161, %p162
      %p164 = scmp.ne.s32.totalorder %s156, %s158
      %p165 = scmp.eq.s32.totalorder %s22, 1
      %p166 = por %p164, %p165
      %p167 = scmp.ne.s32.totalorder %s158, %s159
      %p168 = scmp.eq.s32.totalorder %s22, 0
      %p169 = por %p167, %p168
      %p170 = scmp.ne.s32.totalorder %s158, %s159
      %p171 = scmp.eq.s32.totalorder %s23, 1
      %p172 = por %p170, %p171
      %p174 = scmp.ne.s32.totalorder %s159, %s173
      %p175 = scmp.eq.s32.totalorder %s23, 0
      %p176 = por %p174, %p175
      %s177 = ssub.s32 %s17, %s24
      %p178 = scmp.eq.s32.totalorder %s177, 0
      %s180 = sadd.s32 %s179, 1
      %s181 = scalar_select %p178, %s179, %s180
      %p184 = pneg %p178
      %p185 = scmp.eq.s32.totalorder %s17, 1
      %p186 = por %p184, %p185
      %p187 = scmp.ne.s32.totalorder %s179, %s182
      %p188 = scmp.eq.s32.totalorder %s17, 0
      %p189 = por %p187, %p188
      %p190 = scmp.ne.s32.totalorder %s179, %s182
      %p191 = scmp.eq.s32.totalorder %s22, 1
      %p192 = por %p190, %p191
      %p193 = scmp.ne.s32.totalorder %s182, %s183
      %p194 = scmp.eq.s32.totalorder %s22, 0
      %p195 = por %p193, %p194
      %p196 = scmp.ne.s32.totalorder %s182, %s183
      %p197 = scmp.eq.s32.totalorder %s23, 1
      %p198 = por %p196, %p197
      %p200 = scmp.ne.s32.totalorder %s183, %s199
      %p201 = scmp.eq.s32.totalorder %s23, 0
      %p202 = por %p200, %p201
      %p203 = scmp.le.s32.totalorder 1, %s17
      %p204 = scmp.lt.s32.totalorder %s17, 3
      %p205 = pnand %p203, %p204
      %p206 = pneg %p205
      // Predicated region
      $region9: #{tpu_custom_call.1} parent=5 // pred_check
        _
      $region10: #{tpu_custom_call.1} parent=5 // pred_check_branch
        %208 = sbr.rel (%p205) target = $region12
      $region11: #{tpu_custom_call.1} parent=5 // pred_region
        %s209 = ssub.s32 %s17, 1
        // Predicated region
        $region13: #{tpu_custom_call.1} parent=11 // pred_check
          %p210 = pneg %p64
        $region14: #{tpu_custom_call.1} parent=11 // pred_check_branch
          %212 = sbr.rel (%p210) target = $region16
        $region15: #{tpu_custom_call.1} parent=11 // pred_region
          _
        $region16: #{tpu_custom_call.1} parent=11 // pred_fallthru
          _
        // Predicated region
        $region17: #{tpu_custom_call.1} parent=11 // pred_check
          %p213 = pneg %p85
        $region18: #{tpu_custom_call.1} parent=11 // pred_check_branch
          %215 = sbr.rel (%p213) target = $region20
        $region19: #{tpu_custom_call.1} parent=11 // pred_region
          _
        $region20: #{tpu_custom_call.1} parent=11 // pred_fallthru
          _
        // Predicated region
        $region21: #{tpu_custom_call.1} parent=11 // pred_check
          %p216 = pneg %p106
        $region22: #{tpu_custom_call.1} parent=11 // pred_check_branch
          %218 = sbr.rel (%p216) target = $region24
        $region23: #{tpu_custom_call.1} parent=11 // pred_region
          _
        $region24: #{tpu_custom_call.1} parent=11 // pred_fallthru
          _
        // Predicated region
        $region25: #{tpu_custom_call.1} parent=11 // pred_check
          %p219 = pneg %p127
        $region26: #{tpu_custom_call.1} parent=11 // pred_check_branch
          %221 = sbr.rel (%p219) target = $region28
        $region27: #{tpu_custom_call.1} parent=11 // pred_region
          _
        $region28: #{tpu_custom_call.1} parent=11 // pred_fallthru
          _
        // Predicated region
        $region29: #{tpu_custom_call.1} parent=11 // pred_check
          %p222 = pneg %p148
        $region30: #{tpu_custom_call.1} parent=11 // pred_check_branch
          %224 = sbr.rel (%p222) target = $region32
        $region31: #{tpu_custom_call.1} parent=11 // pred_region
          _
        $region32: #{tpu_custom_call.1} parent=11 // pred_fallthru
          _
        // Predicated region
        $region33: #{tpu_custom_call.1} parent=11 // pred_check
          %p225 = pneg %p169
        $region34: #{tpu_custom_call.1} parent=11 // pred_check_branch
          %227 = sbr.rel (%p225) target = $region36
        $region35: #{tpu_custom_call.1} parent=11 // pred_region
          _
        $region36: #{tpu_custom_call.1} parent=11 // pred_fallthru
          _
      $region12: #{tpu_custom_call.1} parent=5 // pred_fallthru
        _
      %p228 = scmp.lt.s32.totalorder %s17, 2
      // Predicated region
      $region37: #{tpu_custom_call.1} parent=5 // pred_check
        %p229 = pneg %p228
      $region38: #{tpu_custom_call.1} parent=5 // pred_check_branch
        %231 = sbr.rel (%p229) target = $region40
      $region39: #{tpu_custom_call.1} parent=5 // pred_region
        // Predicated region
        $region41: #{tpu_custom_call.1} parent=39 // pred_check
          %p232 = pneg %p37
        $region42: #{tpu_custom_call.1} parent=39 // pred_check_branch
          %234 = sbr.rel (%p232) target = $region44
        $region43: #{tpu_custom_call.1} parent=39 // pred_region
          %p235 = scmp.lt.s32.totalorder %s17, 1
          %s236 = scalar_select %p235, %s17, 1
          %s237 = smul.addr %s236, 2
          %s238 = smul.addr %s237, 4
          %s239 = scalar_lea.vmem %s0, %s238
        $region44: #{tpu_custom_call.1} parent=39 // pred_fallthru
          _
      $region40: #{tpu_custom_call.1} parent=5 // pred_fallthru
        _
      %p240 = scmp.le.s32.totalorder 1, %s17
      %p241 = scmp.lt.s32.totalorder %s17, 3
      %p242 = pnand %p240, %p241
      %p243 = pneg %p242
      // Predicated region
      $region45: #{tpu_custom_call.1} parent=5 // pred_check
        _
      $region46: #{tpu_custom_call.1} parent=5 // pred_check_branch
        %245 = sbr.rel (%p242) target = $region48
      $region47: #{tpu_custom_call.1} parent=5 // pred_region
        %s246 = ssub.s32 %s17, 1
        %p247 = scmp.lt.s32.totalorder %s22, 1
        %s248 = scalar_select %p247, %s22, 1
        %s249 = smul.addr %s248, 2
        %s250 = smul.addr %s249, 4
        %s251 = scalar_lea.vmem %s0, %s250
        %p252 = pneg %p43
        %p253 = pneg %p40
        %p254 = pneg %p64
        %p255 = pneg %p61
        %p256 = pneg %p85
        %p257 = pneg %p82
        %p258 = pneg %p106
        %p259 = pneg %p103
        %p260 = pneg %p127
        %p261 = pneg %p124
        %p262 = pneg %p148
        %p263 = pneg %p145
        %p264 = pneg %p169
        %p265 = pneg %p166
        %p266 = pneg %p195
        %p267 = pneg %p192
        %s268 = sand.u32 %s182, 1
        %s269 = scalar_lea.sflag [#allocation4], %s268
        %s270 = sand.u32 %s182, 1
        %s271 = scalar_lea.vmem [#allocation3], %s270
        %p272 = scmp.lt.s32.totalorder %s22, 1
        %s273 = scalar_select %p272, %s22, 1
        %s274 = smul.addr %s273, 2
        %s275 = smul.addr %s274, 4
        %s276 = scalar_lea.vmem %s0, %s275
        %v277 = vld [vmem:[%s276] sm:$0xff]
        %v278 = vld [vmem:[%s1] sm:$0xff]
        %v279 = vld [vmem:[%s1 + $0x8] sm:$0xff]
        %v280 = vld [vmem:[%s1 + $0x10] sm:$0xff]
        %v281 = vld [vmem:[%s1 + $0x18] sm:$0xff]
        %v282 = vld [vmem:[%s1 + $0x20] sm:$0xff]
        %v283 = vld [vmem:[%s1 + $0x28] sm:$0xff]
        %v284 = vld [vmem:[%s1 + $0x30] sm:$0xff]
        %v285 = vld [vmem:[%s1 + $0x38] sm:$0xff]
        %v286 = vld [vmem:[%s1 + $0x40] sm:$0xff]
        %v287 = vld [vmem:[%s1 + $0x48] sm:$0xff]
        %v288 = vld [vmem:[%s1 + $0x50] sm:$0xff]
        %v289 = vld [vmem:[%s1 + $0x58] sm:$0xff]
        %v290 = vld [vmem:[%s1 + $0x60] sm:$0xff]
        %v291 = vld [vmem:[%s1 + $0x68] sm:$0xff]
        %v292 = vld [vmem:[%s1 + $0x70] sm:$0xff]
        %v293 = vld [vmem:[%s1 + $0x78] sm:$0xff]
        %v294 = vld [vmem:[%s2] sm:$0xff]
        %v295 = vld [vmem:[%s2 + $0x8] sm:$0xff]
        %v296 = vld [vmem:[%s2 + $0x10] sm:$0xff]
        %v297 = vld [vmem:[%s2 + $0x18] sm:$0xff]
        %v298 = vld [vmem:[%s2 + $0x20] sm:$0xff]
        %v299 = vld [vmem:[%s2 + $0x28] sm:$0xff]
        %v300 = vld [vmem:[%s2 + $0x30] sm:$0xff]
        %v301 = vld [vmem:[%s2 + $0x38] sm:$0xff]
        %v302 = vld [vmem:[%s2 + $0x40] sm:$0xff]
        %v303 = vld [vmem:[%s2 + $0x48] sm:$0xff]
        %v304 = vld [vmem:[%s2 + $0x50] sm:$0xff]
        %v305 = vld [vmem:[%s2 + $0x58] sm:$0xff]
        %v306 = vld [vmem:[%s2 + $0x60] sm:$0xff]
        %v307 = vld [vmem:[%s2 + $0x68] sm:$0xff]
        %v308 = vld [vmem:[%s2 + $0x70] sm:$0xff]
        %v309 = vld [vmem:[%s2 + $0x78] sm:$0xff]
        %311 = vset.pattern.permute.xlu0 0
        %312 = vperm.xlu0 %311, %v294
        %v313 = vpop.permute.xlu0 %312
        %316 = vset.pattern.permute.xlu0 0
        %317 = vperm.xlu0 %316, %v295
        %v318 = vpop.permute.xlu0 %317
        %321 = vset.pattern.permute.xlu0 0
        %322 = vperm.xlu0 %321, %v296
        %v323 = vpop.permute.xlu0 %322
        %326 = vset.pattern.permute.xlu0 0
        %327 = vperm.xlu0 %326, %v297
        %v328 = vpop.permute.xlu0 %327
        %331 = vset.pattern.permute.xlu0 0
        %332 = vperm.xlu0 %331, %v298
        %v333 = vpop.permute.xlu0 %332
        %336 = vset.pattern.permute.xlu0 0
        %337 = vperm.xlu0 %336, %v299
        %v338 = vpop.permute.xlu0 %337
        %341 = vset.pattern.permute.xlu0 0
        %342 = vperm.xlu0 %341, %v300
        %v343 = vpop.permute.xlu0 %342
        %346 = vset.pattern.permute.xlu0 0
        %347 = vperm.xlu0 %346, %v301
        %v348 = vpop.permute.xlu0 %347
        %351 = vset.pattern.permute.xlu0 0
        %352 = vperm.xlu0 %351, %v302
        %v353 = vpop.permute.xlu0 %352
        %356 = vset.pattern.permute.xlu0 0
        %357 = vperm.xlu0 %356, %v303
        %v358 = vpop.permute.xlu0 %357
        %361 = vset.pattern.permute.xlu0 0
        %362 = vperm.xlu0 %361, %v304
        %v363 = vpop.permute.xlu0 %362
        %366 = vset.pattern.permute.xlu0 0
        %367 = vperm.xlu0 %366, %v305
        %v368 = vpop.permute.xlu0 %367
        %371 = vset.pattern.permute.xlu0 0
        %372 = vperm.xlu0 %371, %v306
        %v373 = vpop.permute.xlu0 %372
        %376 = vset.pattern.permute.xlu0 0
        %377 = vperm.xlu0 %376, %v307
        %v378 = vpop.permute.xlu0 %377
        %381 = vset.pattern.permute.xlu0 0
        %382 = vperm.xlu0 %381, %v308
        %v383 = vpop.permute.xlu0 %382
        %386 = vset.pattern.permute.xlu0 0
        %387 = vperm.xlu0 %386, %v309
        %v388 = vpop.permute.xlu0 %387
        %391 = vset.pattern.permute.xlu0 0
        %392 = vperm.xlu0 %391, %v278
        %v393 = vpop.permute.xlu0 %392
        %396 = vset.pattern.permute.xlu0 0
        %397 = vperm.xlu0 %396, %v279
        %v398 = vpop.permute.xlu0 %397
        %401 = vset.pattern.permute.xlu0 0
        %402 = vperm.xlu0 %401, %v280
        %v403 = vpop.permute.xlu0 %402
        %406 = vset.pattern.permute.xlu0 0
        %407 = vperm.xlu0 %406, %v281
        %v408 = vpop.permute.xlu0 %407
        %411 = vset.pattern.permute.xlu0 0
        %412 = vperm.xlu0 %411, %v282
        %v413 = vpop.permute.xlu0 %412
        %416 = vset.pattern.permute.xlu0 0
        %417 = vperm.xlu0 %416, %v283
        %v418 = vpop.permute.xlu0 %417
        %421 = vset.pattern.permute.xlu0 0
        %422 = vperm.xlu0 %421, %v284
        %v423 = vpop.permute.xlu0 %422
        %426 = vset.pattern.permute.xlu0 0
        %427 = vperm.xlu0 %426, %v285
        %v428 = vpop.permute.xlu0 %427
        %431 = vset.pattern.permute.xlu0 0
        %432 = vperm.xlu0 %431, %v286
        %v433 = vpop.permute.xlu0 %432
        %436 = vset.pattern.permute.xlu0 0
        %437 = vperm.xlu0 %436, %v287
        %v438 = vpop.permute.xlu0 %437
        %441 = vset.pattern.permute.xlu0 0
        %442 = vperm.xlu0 %441, %v288
        %v443 = vpop.permute.xlu0 %442
        %446 = vset.pattern.permute.xlu0 0
        %447 = vperm.xlu0 %446, %v289
        %v448 = vpop.permute.xlu0 %447
        %451 = vset.pattern.permute.xlu0 0
        %452 = vperm.xlu0 %451, %v290
        %v453 = vpop.permute.xlu0 %452
        %456 = vset.pattern.permute.xlu0 0
        %457 = vperm.xlu0 %456, %v291
        %v458 = vpop.permute.xlu0 %457
        %461 = vset.pattern.permute.xlu0 0
        %462 = vperm.xlu0 %461, %v292
        %v463 = vpop.permute.xlu0 %462
        %466 = vset.pattern.permute.xlu0 0
        %467 = vperm.xlu0 %466, %v293
        %v468 = vpop.permute.xlu0 %467
        %v471 = vperm.slane %v277, 0
        %v472 = vperm.slane %v277, 4
        %v475 = vperm.slane %v471, 0
        %v476 = vperm.slane %v472, 0
        %v477 = vmul.f32 %v393, %v475
        %v478 = vmul.f32 %v393, %v476
        %v479 = vmul.f32 %v398, %v475
        %v480 = vmul.f32 %v398, %v476
        %v481 = vmul.f32 %v403, %v475
        %v482 = vmul.f32 %v403, %v476
        %v483 = vmul.f32 %v408, %v475
        %v484 = vmul.f32 %v408, %v476
        %v485 = vmul.f32 %v413, %v475
        %v486 = vmul.f32 %v413, %v476
        %v487 = vmul.f32 %v418, %v475
        %v488 = vmul.f32 %v418, %v476
        %v489 = vmul.f32 %v423, %v475
        %v490 = vmul.f32 %v423, %v476
        %v491 = vmul.f32 %v428, %v475
        %v492 = vmul.f32 %v428, %v476
        %v493 = vmul.f32 %v433, %v475
        %v494 = vmul.f32 %v433, %v476
        %v495 = vmul.f32 %v438, %v475
        %v496 = vmul.f32 %v438, %v476
        %v497 = vmul.f32 %v443, %v475
        %v498 = vmul.f32 %v443, %v476
        %v499 = vmul.f32 %v448, %v475
        %v500 = vmul.f32 %v448, %v476
        %v501 = vmul.f32 %v453, %v475
        %v502 = vmul.f32 %v453, %v476
        %v503 = vmul.f32 %v458, %v475
        %v504 = vmul.f32 %v458, %v476
        %v505 = vmul.f32 %v463, %v475
        %v506 = vmul.f32 %v463, %v476
        %v507 = vmul.f32 %v468, %v475
        %v508 = vmul.f32 %v468, %v476
        %v509 = vadd.f32 %v313, %v477
        %v510 = vadd.f32 %v313, %v478
        %v511 = vadd.f32 %v318, %v479
        %v512 = vadd.f32 %v318, %v480
        %v513 = vadd.f32 %v323, %v481
        %v514 = vadd.f32 %v323, %v482
        %v515 = vadd.f32 %v328, %v483
        %v516 = vadd.f32 %v328, %v484
        %v517 = vadd.f32 %v333, %v485
        %v518 = vadd.f32 %v333, %v486
        %v519 = vadd.f32 %v338, %v487
        %v520 = vadd.f32 %v338, %v488
        %v521 = vadd.f32 %v343, %v489
        %v522 = vadd.f32 %v343, %v490
        %v523 = vadd.f32 %v348, %v491
        %v524 = vadd.f32 %v348, %v492
        %v525 = vadd.f32 %v353, %v493
        %v526 = vadd.f32 %v353, %v494
        %v527 = vadd.f32 %v358, %v495
        %v528 = vadd.f32 %v358, %v496
        %v529 = vadd.f32 %v363, %v497
        %v530 = vadd.f32 %v363, %v498
        %v531 = vadd.f32 %v368, %v499
        %v532 = vadd.f32 %v368, %v500
        %v533 = vadd.f32 %v373, %v501
        %v534 = vadd.f32 %v373, %v502
        %v535 = vadd.f32 %v378, %v503
        %v536 = vadd.f32 %v378, %v504
        %v537 = vadd.f32 %v383, %v505
        %v538 = vadd.f32 %v383, %v506
        %v539 = vadd.f32 %v388, %v507
        %v540 = vadd.f32 %v388, %v508
        %541 = vset.pattern.permute.xlu0 1
        %542 = vperm.xlu0 %541, %v278
        %v543 = vpop.permute.xlu0 %542
        %545 = vset.pattern.permute.xlu0 1
        %546 = vperm.xlu0 %545, %v279
        %v547 = vpop.permute.xlu0 %546
        %549 = vset.pattern.permute.xlu0 1
        %550 = vperm.xlu0 %549, %v280
        %v551 = vpop.permute.xlu0 %550
        %553 = vset.pattern.permute.xlu0 1
        %554 = vperm.xlu0 %553, %v281
        %v555 = vpop.permute.xlu0 %554
        %557 = vset.pattern.permute.xlu0 1
        %558 = vperm.xlu0 %557, %v282
        %v559 = vpop.permute.xlu0 %558
        %561 = vset.pattern.permute.xlu0 1
        %562 = vperm.xlu0 %561, %v283
        %v563 = vpop.permute.xlu0 %562
        %565 = vset.pattern.permute.xlu0 1
        %566 = vperm.xlu0 %565, %v284
        %v567 = vpop.permute.xlu0 %566
        %569 = vset.pattern.permute.xlu0 1
        %570 = vperm.xlu0 %569, %v285
        %v571 = vpop.permute.xlu0 %570
        %573 = vset.pattern.permute.xlu0 1
        %574 = vperm.xlu0 %573, %v286
        %v575 = vpop.permute.xlu0 %574
        %577 = vset.pattern.permute.xlu0 1
        %578 = vperm.xlu0 %577, %v287
        %v579 = vpop.permute.xlu0 %578
        %581 = vset.pattern.permute.xlu0 1
        %582 = vperm.xlu0 %581, %v288
        %v583 = vpop.permute.xlu0 %582
        %585 = vset.pattern.permute.xlu0 1
        %586 = vperm.xlu0 %585, %v289
        %v587 = vpop.permute.xlu0 %586
        %589 = vset.pattern.permute.xlu0 1
        %590 = vperm.xlu0 %589, %v290
        %v591 = vpop.permute.xlu0 %590
        %593 = vset.pattern.permute.xlu0 1
        %594 = vperm.xlu0 %593, %v291
        %v595 = vpop.permute.xlu0 %594
        %597 = vset.pattern.permute.xlu0 1
        %598 = vperm.xlu0 %597, %v292
        %v599 = vpop.permute.xlu0 %598
        %601 = vset.pattern.permute.xlu0 1
        %602 = vperm.xlu0 %601, %v293
        %v603 = vpop.permute.xlu0 %602
        %v605 = vperm.slane %v277, 1
        %v606 = vperm.slane %v277, 5
        %v609 = vperm.slane %v605, 1
        %v610 = vperm.slane %v606, 1
        %v611 = vmul.f32 %v543, %v609
        %v612 = vmul.f32 %v543, %v610
        %v613 = vmul.f32 %v547, %v609
        %v614 = vmul.f32 %v547, %v610
        %v615 = vmul.f32 %v551, %v609
        %v616 = vmul.f32 %v551, %v610
        %v617 = vmul.f32 %v555, %v609
        %v618 = vmul.f32 %v555, %v610
        %v619 = vmul.f32 %v559, %v609
        %v620 = vmul.f32 %v559, %v610
        %v621 = vmul.f32 %v563, %v609
        %v622 = vmul.f32 %v563, %v610
        %v623 = vmul.f32 %v567, %v609
        %v624 = vmul.f32 %v567, %v610
        %v625 = vmul.f32 %v571, %v609
        %v626 = vmul.f32 %v571, %v610
        %v627 = vmul.f32 %v575, %v609
        %v628 = vmul.f32 %v575, %v610
        %v629 = vmul.f32 %v579, %v609
        %v630 = vmul.f32 %v579, %v610
        %v631 = vmul.f32 %v583, %v609
        %v632 = vmul.f32 %v583, %v610
        %v633 = vmul.f32 %v587, %v609
        %v634 = vmul.f32 %v587, %v610
        %v635 = vmul.f32 %v591, %v609
        %v636 = vmul.f32 %v591, %v610
        %v637 = vmul.f32 %v595, %v609
        %v638 = vmul.f32 %v595, %v610
        %v639 = vmul.f32 %v599, %v609
        %v640 = vmul.f32 %v599, %v610
        %v641 = vmul.f32 %v603, %v609
        %v642 = vmul.f32 %v603, %v610
        %v643 = vadd.f32 %v509, %v611
        %v644 = vadd.f32 %v510, %v612
        %v645 = vadd.f32 %v511, %v613
        %v646 = vadd.f32 %v512, %v614
        %v647 = vadd.f32 %v513, %v615
        %v648 = vadd.f32 %v514, %v616
        %v649 = vadd.f32 %v515, %v617
        %v650 = vadd.f32 %v516, %v618
        %v651 = vadd.f32 %v517, %v619
        %v652 = vadd.f32 %v518, %v620
        %v653 = vadd.f32 %v519, %v621
        %v654 = vadd.f32 %v520, %v622
        %v655 = vadd.f32 %v521, %v623
        %v656 = vadd.f32 %v522, %v624
        %v657 = vadd.f32 %v523, %v625
        %v658 = vadd.f32 %v524, %v626
        %v659 = vadd.f32 %v525, %v627
        %v660 = vadd.f32 %v526, %v628
        %v661 = vadd.f32 %v527, %v629
        %v662 = vadd.f32 %v528, %v630
        %v663 = vadd.f32 %v529, %v631
        %v664 = vadd.f32 %v530, %v632
        %v665 = vadd.f32 %v531, %v633
        %v666 = vadd.f32 %v532, %v634
        %v667 = vadd.f32 %v533, %v635
        %v668 = vadd.f32 %v534, %v636
        %v669 = vadd.f32 %v535, %v637
        %v670 = vadd.f32 %v536, %v638
        %v671 = vadd.f32 %v537, %v639
        %v672 = vadd.f32 %v538, %v640
        %v673 = vadd.f32 %v539, %v641
        %v674 = vadd.f32 %v540, %v642
        %675 = vset.pattern.permute.xlu0 2
        %676 = vperm.xlu0 %675, %v278
        %v677 = vpop.permute.xlu0 %676
        %679 = vset.pattern.permute.xlu0 2
        %680 = vperm.xlu0 %679, %v279
        %v681 = vpop.permute.xlu0 %680
        %683 = vset.pattern.permute.xlu0 2
        %684 = vperm.xlu0 %683, %v280
        %v685 = vpop.permute.xlu0 %684
        %687 = vset.pattern.permute.xlu0 2
        %688 = vperm.xlu0 %687, %v281
        %v689 = vpop.permute.xlu0 %688
        %691 = vset.pattern.permute.xlu0 2
        %692 = vperm.xlu0 %691, %v282
        %v693 = vpop.permute.xlu0 %692
        %695 = vset.pattern.permute.xlu0 2
        %696 = vperm.xlu0 %695, %v283
        %v697 = vpop.permute.xlu0 %696
        %699 = vset.pattern.permute.xlu0 2
        %700 = vperm.xlu0 %699, %v284
        %v701 = vpop.permute.xlu0 %700
        %703 = vset.pattern.permute.xlu0 2
        %704 = vperm.xlu0 %703, %v285
        %v705 = vpop.permute.xlu0 %704
        %707 = vset.pattern.permute.xlu0 2
        %708 = vperm.xlu0 %707, %v286
        %v709 = vpop.permute.xlu0 %708
        %711 = vset.pattern.permute.xlu0 2
        %712 = vperm.xlu0 %711, %v287
        %v713 = vpop.permute.xlu0 %712
        %715 = vset.pattern.permute.xlu0 2
        %716 = vperm.xlu0 %715, %v288
        %v717 = vpop.permute.xlu0 %716
        %719 = vset.pattern.permute.xlu0 2
        %720 = vperm.xlu0 %719, %v289
        %v721 = vpop.permute.xlu0 %720
        %723 = vset.pattern.permute.xlu0 2
        %724 = vperm.xlu0 %723, %v290
        %v725 = vpop.permute.xlu0 %724
        %727 = vset.pattern.permute.xlu0 2
        %728 = vperm.xlu0 %727, %v291
        %v729 = vpop.permute.xlu0 %728
        %731 = vset.pattern.permute.xlu0 2
        %732 = vperm.xlu0 %731, %v292
        %v733 = vpop.permute.xlu0 %732
        %735 = vset.pattern.permute.xlu0 2
        %736 = vperm.xlu0 %735, %v293
        %v737 = vpop.permute.xlu0 %736
        %v739 = vperm.slane %v277, 2
        %v740 = vperm.slane %v277, 6
        %v743 = vperm.slane %v739, 2
        %v744 = vperm.slane %v740, 2
        %v745 = vmul.f32 %v677, %v743
        %v746 = vmul.f32 %v677, %v744
        %v747 = vmul.f32 %v681, %v743
        %v748 = vmul.f32 %v681, %v744
        %v749 = vmul.f32 %v685, %v743
        %v750 = vmul.f32 %v685, %v744
        %v751 = vmul.f32 %v689, %v743
        %v752 = vmul.f32 %v689, %v744
        %v753 = vmul.f32 %v693, %v743
        %v754 = vmul.f32 %v693, %v744
        %v755 = vmul.f32 %v697, %v743
        %v756 = vmul.f32 %v697, %v744
        %v757 = vmul.f32 %v701, %v743
        %v758 = vmul.f32 %v701, %v744
        %v759 = vmul.f32 %v705, %v743
        %v760 = vmul.f32 %v705, %v744
        %v761 = vmul.f32 %v709, %v743
        %v762 = vmul.f32 %v709, %v744
        %v763 = vmul.f32 %v713, %v743
        %v764 = vmul.f32 %v713, %v744
        %v765 = vmul.f32 %v717, %v743
        %v766 = vmul.f32 %v717, %v744
        %v767 = vmul.f32 %v721, %v743
        %v768 = vmul.f32 %v721, %v744
        %v769 = vmul.f32 %v725, %v743
        %v770 = vmul.f32 %v725, %v744
        %v771 = vmul.f32 %v729, %v743
        %v772 = vmul.f32 %v729, %v744
        %v773 = vmul.f32 %v733, %v743
        %v774 = vmul.f32 %v733, %v744
        %v775 = vmul.f32 %v737, %v743
        %v776 = vmul.f32 %v737, %v744
        %v777 = vadd.f32 %v643, %v745
        %v778 = vadd.f32 %v644, %v746
        %v779 = vadd.f32 %v645, %v747
        %v780 = vadd.f32 %v646, %v748
        %v781 = vadd.f32 %v647, %v749
        %v782 = vadd.f32 %v648, %v750
        %v783 = vadd.f32 %v649, %v751
        %v784 = vadd.f32 %v650, %v752
        %v785 = vadd.f32 %v651, %v753
        %v786 = vadd.f32 %v652, %v754
        %v787 = vadd.f32 %v653, %v755
        %v788 = vadd.f32 %v654, %v756
        %v789 = vadd.f32 %v655, %v757
        %v790 = vadd.f32 %v656, %v758
        %v791 = vadd.f32 %v657, %v759
        %v792 = vadd.f32 %v658, %v760
        %v793 = vadd.f32 %v659, %v761
        %v794 = vadd.f32 %v660, %v762
        %v795 = vadd.f32 %v661, %v763
        %v796 = vadd.f32 %v662, %v764
        %v797 = vadd.f32 %v663, %v765
        %v798 = vadd.f32 %v664, %v766
        %v799 = vadd.f32 %v665, %v767
        %v800 = vadd.f32 %v666, %v768
        %v801 = vadd.f32 %v667, %v769
        %v802 = vadd.f32 %v668, %v770
        %v803 = vadd.f32 %v669, %v771
        %v804 = vadd.f32 %v670, %v772
        %v805 = vadd.f32 %v671, %v773
        %v806 = vadd.f32 %v672, %v774
        %v807 = vadd.f32 %v673, %v775
        %v808 = vadd.f32 %v674, %v776
        %809 = vset.pattern.permute.xlu0 3
        %810 = vperm.xlu0 %809, %v278
        %v811 = vpop.permute.xlu0 %810
        %813 = vset.pattern.permute.xlu0 3
        %814 = vperm.xlu0 %813, %v279
        %v815 = vpop.permute.xlu0 %814
        %817 = vset.pattern.permute.xlu0 3
        %818 = vperm.xlu0 %817, %v280
        %v819 = vpop.permute.xlu0 %818
        %821 = vset.pattern.permute.xlu0 3
        %822 = vperm.xlu0 %821, %v281
        %v823 = vpop.permute.xlu0 %822
        %825 = vset.pattern.permute.xlu0 3
        %826 = vperm.xlu0 %825, %v282
        %v827 = vpop.permute.xlu0 %826
        %829 = vset.pattern.permute.xlu0 3
        %830 = vperm.xlu0 %829, %v283
        %v831 = vpop.permute.xlu0 %830
        %833 = vset.pattern.permute.xlu0 3
        %834 = vperm.xlu0 %833, %v284
        %v835 = vpop.permute.xlu0 %834
        %837 = vset.pattern.permute.xlu0 3
        %838 = vperm.xlu0 %837, %v285
        %v839 = vpop.permute.xlu0 %838
        %841 = vset.pattern.permute.xlu0 3
        %842 = vperm.xlu0 %841, %v286
        %v843 = vpop.permute.xlu0 %842
        %845 = vset.pattern.permute.xlu0 3
        %846 = vperm.xlu0 %845, %v287
        %v847 = vpop.permute.xlu0 %846
        %849 = vset.pattern.permute.xlu0 3
        %850 = vperm.xlu0 %849, %v288
        %v851 = vpop.permute.xlu0 %850
        %853 = vset.pattern.permute.xlu0 3
        %854 = vperm.xlu0 %853, %v289
        %v855 = vpop.permute.xlu0 %854
        %857 = vset.pattern.permute.xlu0 3
        %858 = vperm.xlu0 %857, %v290
        %v859 = vpop.permute.xlu0 %858
        %861 = vset.pattern.permute.xlu0 3
        %862 = vperm.xlu0 %861, %v291
        %v863 = vpop.permute.xlu0 %862
        %865 = vset.pattern.permute.xlu0 3
        %866 = vperm.xlu0 %865, %v292
        %v867 = vpop.permute.xlu0 %866
        %869 = vset.pattern.permute.xlu0 3
        %870 = vperm.xlu0 %869, %v293
        %v871 = vpop.permute.xlu0 %870
        %v873 = vperm.slane %v277, 3
        %v874 = vperm.slane %v277, 7
        %v877 = vperm.slane %v873, 3
        %v878 = vperm.slane %v874, 3
        %v879 = vmul.f32 %v811, %v877
        %v880 = vmul.f32 %v811, %v878
        %v881 = vmul.f32 %v815, %v877
        %v882 = vmul.f32 %v815, %v878
        %v883 = vmul.f32 %v819, %v877
        %v884 = vmul.f32 %v819, %v878
        %v885 = vmul.f32 %v823, %v877
        %v886 = vmul.f32 %v823, %v878
        %v887 = vmul.f32 %v827, %v877
        %v888 = vmul.f32 %v827, %v878
        %v889 = vmul.f32 %v831, %v877
        %v890 = vmul.f32 %v831, %v878
        %v891 = vmul.f32 %v835, %v877
        %v892 = vmul.f32 %v835, %v878
        %v893 = vmul.f32 %v839, %v877
        %v894 = vmul.f32 %v839, %v878
        %v895 = vmul.f32 %v843, %v877
        %v896 = vmul.f32 %v843, %v878
        %v897 = vmul.f32 %v847, %v877
        %v898 = vmul.f32 %v847, %v878
        %v899 = vmul.f32 %v851, %v877
        %v900 = vmul.f32 %v851, %v878
        %v901 = vmul.f32 %v855, %v877
        %v902 = vmul.f32 %v855, %v878
        %v903 = vmul.f32 %v859, %v877
        %v904 = vmul.f32 %v859, %v878
        %v905 = vmul.f32 %v863, %v877
        %v906 = vmul.f32 %v863, %v878
        %v907 = vmul.f32 %v867, %v877
        %v908 = vmul.f32 %v867, %v878
        %v909 = vmul.f32 %v871, %v877
        %v910 = vmul.f32 %v871, %v878
        %v911 = vadd.f32 %v777, %v879
        %v912 = vadd.f32 %v778, %v880
        %v913 = vadd.f32 %v779, %v881
        %v914 = vadd.f32 %v780, %v882
        %v915 = vadd.f32 %v781, %v883
        %v916 = vadd.f32 %v782, %v884
        %v917 = vadd.f32 %v783, %v885
        %v918 = vadd.f32 %v784, %v886
        %v919 = vadd.f32 %v785, %v887
        %v920 = vadd.f32 %v786, %v888
        %v921 = vadd.f32 %v787, %v889
        %v922 = vadd.f32 %v788, %v890
        %v923 = vadd.f32 %v789, %v891
        %v924 = vadd.f32 %v790, %v892
        %v925 = vadd.f32 %v791, %v893
        %v926 = vadd.f32 %v792, %v894
        %v927 = vadd.f32 %v793, %v895
        %v928 = vadd.f32 %v794, %v896
        %v929 = vadd.f32 %v795, %v897
        %v930 = vadd.f32 %v796, %v898
        %v931 = vadd.f32 %v797, %v899
        %v932 = vadd.f32 %v798, %v900
        %v933 = vadd.f32 %v799, %v901
        %v934 = vadd.f32 %v800, %v902
        %v935 = vadd.f32 %v801, %v903
        %v936 = vadd.f32 %v802, %v904
        %v937 = vadd.f32 %v803, %v905
        %v938 = vadd.f32 %v804, %v906
        %v939 = vadd.f32 %v805, %v907
        %v940 = vadd.f32 %v806, %v908
        %v941 = vadd.f32 %v807, %v909
        %v942 = vadd.f32 %v808, %v910
        %v943 = vtanh.pop %v911
        %v944 = vtanh.pop %v912
        %v945 = vtanh.pop %v913
        %v946 = vtanh.pop %v914
        %v947 = vtanh.pop %v915
        %v948 = vtanh.pop %v916
        %v949 = vtanh.pop %v917
        %v950 = vtanh.pop %v918
        %v951 = vtanh.pop %v919
        %v952 = vtanh.pop %v920
        %v953 = vtanh.pop %v921
        %v954 = vtanh.pop %v922
        %v955 = vtanh.pop %v923
        %v956 = vtanh.pop %v924
        %v957 = vtanh.pop %v925
        %v958 = vtanh.pop %v926
        %v959 = vtanh.pop %v927
        %v960 = vtanh.pop %v928
        %v961 = vtanh.pop %v929
        %v962 = vtanh.pop %v930
        %v963 = vtanh.pop %v931
        %v964 = vtanh.pop %v932
        %v965 = vtanh.pop %v933
        %v966 = vtanh.pop %v934
        %v967 = vtanh.pop %v935
        %v968 = vtanh.pop %v936
        %v969 = vtanh.pop %v937
        %v970 = vtanh.pop %v938
        %v971 = vtanh.pop %v939
        %v972 = vtanh.pop %v940
        %v973 = vtanh.pop %v941
        %v974 = vtanh.pop %v942
        %v975 = vld [vmem:[%s3] sm:$0x1]
        %s976 = sld [smem:[#allocation2]]
        %v977 = vstv %s976
        %978 = vmatpush.msra.mxu0 %v973
        %979 = vmatpush.msra.mxu0 %v971
        %980 = vmatpush.msra.mxu0 %v969
        %981 = vmatpush.msra.mxu0 %v967
        %982 = vmatpush.msra.mxu0 %v965
        %983 = vmatpush.msra.mxu0 %v963
        %984 = vmatpush.msra.mxu0 %v961
        %985 = vmatpush.msra.mxu0 %v959
        %986 = vmatpush.msra.mxu0 %v957
        %987 = vmatpush.msra.mxu0 %v955
        %988 = vmatpush.msra.mxu0 %v953
        %989 = vmatpush.msra.mxu0 %v951
        %990 = vmatpush.msra.mxu0 %v949
        %991 = vmatpush.msra.mxu0 %v947
        %992 = vmatpush.msra.mxu0 %v945
        %993 = vmatpush.msra.mxu0 %v943
        %994 = vmatmul.f32.gmra.mxu0 %v975
        %v995 = vpop.f32.mrf.mxu0
        %v996 = vadd.f32 %v977, %v995
        %997 = vdwg.mxu0
        %998 = vmatpush.msra.mxu0 %v974
        %999 = vmatpush.msra.mxu0 %v972
        %1000 = vmatpush.msra.mxu0 %v970
        %1001 = vmatpush.msra.mxu0 %v968
        %1002 = vmatpush.msra.mxu0 %v966
        %1003 = vmatpush.msra.mxu0 %v964
        %1004 = vmatpush.msra.mxu0 %v962
        %1005 = vmatpush.msra.mxu0 %v960
        %1006 = vmatpush.msra.mxu0 %v958
        %1007 = vmatpush.msra.mxu0 %v956
        %1008 = vmatpush.msra.mxu0 %v954
        %1009 = vmatpush.msra.mxu0 %v952
        %1010 = vmatpush.msra.mxu0 %v950
        %1011 = vmatpush.msra.mxu0 %v948
        %1012 = vmatpush.msra.mxu0 %v946
        %1013 = vmatpush.msra.mxu0 %v944
        %1014 = vmatmul.f32.gmra.mxu0 %v975
        %v1015 = vpop.f32.mrf.mxu0
        %v1016 = vadd.f32 %v977, %v1015
        %1017 = vdwg.mxu0
        %vm1018 = vcmask 1040384
        %v1019 = vsel %vm1018, %v996, -inf
        %v1020 = vsel %vm1018, %v1016, -inf
        %v1021 = vmax.f32 %v1019, %v1020
        %1022 = vmax.xlane.f32.xlu0 %v1021
        %v1023 = vpop.xlane.xlu0 %1022
        %v1024 = vsub.f32 %v996, %v1023
        %v1025 = vsub.f32 %v1016, %v1023
        %v1026 = vmul.f32 %v1024, 1.442695
        %v1027 = vpow.pop %v1026
        %v1028 = vmul.f32 %v1025, 1.442695
        %v1029 = vpow.pop %v1028
        %v1030 = vsel %vm1018, %v1027, 0.0
        %v1031 = vsel %vm1018, %v1029, 0.0
        %v1032 = vadd.f32 %v1030, %v1031
        %1033 = vadd.xlane.f32.xlu0 %v1032
        %v1034 = vpop.xlane.xlu0 %1033
        %v1035 = vrcp.pop %v1034
        %v1036 = vmul.f32 %v1034, %v1035
        %v1037 = vsub.f32 1.0, %v1036
        %v1038 = vmul.f32 %v1035, %v1037
        %v1039 = vadd.f32 %v1035, %v1038
        %vm1040 = vweird.f32 %v1034
        %vm1041 = vweird.f32 %v1035
        %vm1042 = vmor %vm1040, %vm1041
        %v1043 = vsel %vm1042, %v1035, %v1039
        %v1044 = vand.u32 2147483647, %v1034
        %vm1045 = vcmp.eq.f32.partialorder %v1044, 8.507059e+37
        %v1046 = vand.u32 %v1034, 2147483648
        %v1047 = vor.u32 1.1754944e-38, %v1046
        %v1048 = vsel %vm1045, %v1047, %v1043
        %v1049 = vmul.f32 %v1027, %v1048
        %v1050 = vmul.f32 %v1029, %v1048
        %v1051 = vperm.slane %v1049, 0
        %v1052 = vperm.slane %v1050, 0
        %v1055 = vrot.slane %v1052, 4
        %vm1056 = vcmask 1043456
        %v1057 = vsel %vm1056, %v1051, %v1055
        %v1059 = vmul.f32 %v277, %v1057
        %1061 = vst [vmem:[#allocation1] ss:$2 sm:$0xff] %v1059
        %v1062 = vld.sshfl [vmem:[#allocation1] sm:$0xff pattern:$0x75316420]
        %v1063 = vld.sshfl [vmem:[#allocation1 + $0x8] sm:$0xff pattern:$0x75316420]
        %v1066 = vsel %vm1056, %v1062, 0.0
        %v1067 = vsel %vm1056, %v1063, 0.0
        %v1068 = vadd.f32 %v1066, %v1067
        %1069 = vadd.xlane.f32.xlu0 %v1068
        %v1070 = vpop.xlane.xlu0 %1069
        %v1071 = vld [vmem:[%s5] sm:$0xf]
        %v1072 = vmul.f32 %v1070, %v1071
        %vm1073 = vcmask 27648
        %v1074 = vsel %vm1073, %v1072, 0.0
        %v1075 = vrot.slane %v1074, 4
        %v1076 = vadd.f32 %v1074, %v1075
        %v1077 = vrot.slane %v1076, 2
        %v1078 = vadd.f32 %v1076, %v1077
        %v1079 = vrot.slane %v1078, 1
        %v1080 = vadd.f32 %v1078, %v1079
        %v1081 = vld [vmem:[%s6] sm:$0x1]
        %v1082 = vadd.f32 %v1080, %v1081
        %vm1083 = vcmask 24576
        %1084 = vst.msk [vmem:[%s271] sm:$0x1] %vm1083, %v1082
        %s1085 = sand.u32 %s182, 1
        %s1086 = scalar_lea.sflag [#allocation4], %s1085
        %s1087 = sand.u32 %s182, 1
        %s1088 = scalar_lea.vmem [#allocation3], %s1087
        // Predicated region
        $region49: #{tpu_custom_call.1} parent=47 // pred_check
          %p1089 = pneg %p192
        $region50: #{tpu_custom_call.1} parent=47 // pred_check_branch
          %1091 = sbr.rel (%p1089) target = $region52
        $region51: #{tpu_custom_call.1} parent=47 // pred_region
          %1093 = vsyncadd %s1086, 0
          %s1094 = scalar_lea.hbm %s7, %s22
          %s1096 = sshll.u32 %s1088, 4
          %s1097 = int_to_ptr.vmem [resolvable:$true] %s1096
          %s1098 = sshll.u32 %s1094, 4
          %s1099 = int_to_ptr.hbm [resolvable:$true] %s1098
          %1101 = dma.vmem_to_hbm [thread:$0]  %s1097, 16, %s1099, %s1086
        $region52: #{tpu_custom_call.1} parent=47 // pred_fallthru
          _
      $region48: #{tpu_custom_call.1} parent=5 // pred_fallthru
        _
      %p1102 = scmp.le.s32.totalorder 2, %s17
      // Predicated region
      $region53: #{tpu_custom_call.1} parent=5 // pred_check
        %p1103 = pneg %p1102
      $region54: #{tpu_custom_call.1} parent=5 // pred_check_branch
        %1105 = sbr.rel (%p1103) target = $region56
      $region55: #{tpu_custom_call.1} parent=5 // pred_region
        %s1106 = ssub.s32 %s17, 2
        // Predicated region
        $region57: #{tpu_custom_call.1} parent=55 // pred_check
          %p1107 = pneg %p198
        $region58: #{tpu_custom_call.1} parent=55 // pred_check_branch
          %1109 = sbr.rel (%p1107) target = $region60
        $region59: #{tpu_custom_call.1} parent=55 // pred_region
          %s1110 = sand.u32 %s183, 1
          %s1111 = scalar_lea.sflag [#allocation4], %s1110
          %s1112 = sand.u32 %s183, 1
          %s1113 = scalar_lea.vmem [#allocation3], %s1112
          %1115 = dma.done %s1111, 16
        $region60: #{tpu_custom_call.1} parent=55 // pred_fallthru
          _
      $region56: #{tpu_custom_call.1} parent=5 // pred_fallthru
        _
    $region6: #{tpu_custom_call.1} parent=1 // loop_footer
      %s21 = sadd.s32 1, %s17
    $region7: #{tpu_custom_call.1} parent=1 // loop_footer_branch
      %16 = sbr.rel target = $region3
    $region8: #{tpu_custom_call.1} parent=1 // loop_exit
      _
    %1116 = vsyncpa [#allocation4], 1
    %s1117 = scalar_lea.sflag [#allocation4], 1
    %1118 = vsyncpa %s1117, 1

</llo_original>
